<compile_context>
chip_gen: v6e
topology: v6e:2x2x1
jax: 0.10.0
libtpu: 0.0.40
codegen_flags: <defaults>
</compile_context>

<pallas_src>
import jax
import jax.numpy as jnp
from jax.experimental import pallas as pl
from jax.experimental.pallas import tpu as pltpu


def _round_up(n: int, m: int) -> int:
    return ((n + m - 1) // m) * m


def _make_mlp_kernel(num_layers: int, activation: str):
    """Fused MLP kernel. Ref order: (x, W0, b0, ..., W_{L-1}, b_{L-1}, out).

    Last layer gets softmax(dim=1); all earlier layers get the hidden
    activation (relu / sigmoid / tanh, matching the PyTorch module).
    """

    def _act(h):
        if activation == "sigmoid":
            return jax.nn.sigmoid(h)
        elif activation == "tanh":
            return jnp.tanh(h)
        # default: ReLU (matches nn.ReLU())
        return jnp.maximum(h, 0.0)

    def kernel(*refs):
        x_ref = refs[0]
        out_ref = refs[-1]
        p = refs[1:-1]

        # Layer 1: bf16 x @ bf16 W0 on the MXU with f32 accumulation.
        h = jnp.dot(x_ref[...], p[0][...], preferred_element_type=jnp.float32)
        h = _act(h + p[1][...])

        # Remaining layers are tiny (<=32 wide): keep them fused, all f32.
        for l in range(1, num_layers):
            w = p[2 * l][...]          # (in, out) f32
            b = p[2 * l + 1][...]      # (1, out)  f32
            h = jnp.dot(h, w, preferred_element_type=jnp.float32) + b
            if l < num_layers - 1:
                h = _act(h)

        # Softmax over dim=1 (numerically stable), matches nn.Softmax(dim=1).
        m = jnp.max(h, axis=1, keepdims=True)
        e = jnp.exp(h - m)
        s = jnp.sum(e, axis=1, keepdims=True)
        out_ref[...] = (e * pl.reciprocal(s, approx=True)).astype(out_ref.dtype)

    return kernel


def mlp_forward(x, params, activation: str = "relu", block_rows: int = 1024):
    """params: list of (W, b) with W shape (in, out), b shape (out,)."""
    num_layers = len(params)
    B, in_dim = x.shape
    out_dim = params[-1][0].shape[1]

    # Batch tile: multiple of 16 (bf16 sublane packing), capped at block_rows.
    tb = min(block_rows, _round_up(B, 16))
    b_pad = _round_up(B, tb)

    # Stream x (and hold W0) in bf16 to halve HBM bytes; f32 accumulate on MXU.
    x_in = x.astype(jnp.bfloat16)
    if b_pad != B:
        x_in = jnp.pad(x_in, ((0, b_pad - B), (0, 0)))

    flat = []
    for l, (w, b) in enumerate(params):
        w_dtype = jnp.bfloat16 if l == 0 else jnp.float32
        flat.append(w.astype(w_dtype))
        flat.append(b.reshape(1, -1).astype(jnp.float32))

    grid = (b_pad // tb,)

    # x: tiled over the batch grid; params: full-array blocks with constant
    # index maps so they stay VMEM-resident across grid steps.
    in_specs = [pl.BlockSpec((tb, in_dim), lambda i: (i, 0))]
    for arr in flat:
        in_specs.append(pl.BlockSpec(arr.shape, lambda i: (0, 0)))
    out_specs = pl.BlockSpec((tb, out_dim), lambda i: (i, 0))

    # Advisory cost estimate for the XLA scheduler.
    flops = 2 * b_pad * sum(w.shape[0] * w.shape[1] for w, _ in params)
    bytes_accessed = (
        x_in.size * x_in.dtype.itemsize
        + sum(a.size * a.dtype.itemsize for a in flat)
        + b_pad * out_dim * 4
    )
    transcendentals = b_pad * out_dim  # exp in softmax

    kernel = _make_mlp_kernel(num_layers, activation)

    y = pl.pallas_call(
        kernel,
        out_shape=jax.ShapeDtypeStruct((b_pad, out_dim), jnp.float32),
        grid=grid,
        in_specs=in_specs,
        out_specs=out_specs,
        compiler_params=pltpu.CompilerParams(
            dimension_semantics=("parallel",),
        ),
        cost_estimate=pl.CostEstimate(
            flops=flops,
            transcendentals=transcendentals,
            bytes_accessed=bytes_accessed,
        ),
    )(x_in, *flat)

    # Padded rows (softmax of bias-only logits) are sliced off here.
    return y[:B]


def _init_linear(key, fan_in, fan_out):
    """Deterministic init mimicking PyTorch nn.Linear default:
    U(-1/sqrt(fan_in), 1/sqrt(fan_in)) for both weight and bias.
    Weight is generated directly as (fan_in, fan_out) (already transposed)."""
    kw, kb = jax.random.split(key)
    bound = 1.0 / jnp.sqrt(jnp.float32(fan_in))
    w = jax.random.uniform(kw, (fan_in, fan_out), jnp.float32, -bound, bound)
    b = jax.random.uniform(kb, (fan_out,), jnp.float32, -bound, bound)
    return w, b


def _ref_forward(x, params, activation):
    """Pure-JAX reference of Method_MLP.forward (f32 everywhere)."""
    def act(h):
        if activation == "sigmoid":
            return jax.nn.sigmoid(h)
        elif activation == "tanh":
            return jnp.tanh(h)
        return jnp.maximum(h, 0.0)

    h = x
    for l, (w, b) in enumerate(params):
        h = h @ w + b
        if l < len(params) - 1:
            h = act(h)
    return jax.nn.softmax(h, axis=1)


if __name__ == "__main__":
    # Module configuration (mirrors Method_MLP.__init__):
    #   fc_layer_1: Linear(784, 28)
    #   hidden_layers = [(28, 32), (32, 28)]   (valid chain 28 -> 32 -> 28)
    #   fc_layer_2: Linear(28, 10)
    #   activation_function default hidden activation = nn.ReLU()
    hidden_layers = [(28, 32), (32, 28)]
    activation = "relu"

    key = jax.random.PRNGKey(0)
    k_x, k1, kh1, kh2, k2 = jax.random.split(key, 5)

    B = 8
    x = jax.random.normal(k_x, (B, 784), jnp.float32)

    params = []
    params.append(_init_linear(k1, 784, 28))              # fc_layer_1
    params.append(_init_linear(kh1, *hidden_layers[0]))   # hidden_layer_1
    params.append(_init_linear(kh2, *hidden_layers[1]))   # hidden_layer_2
    params.append(_init_linear(k2, 28, 10))               # fc_layer_2

    y_pred = mlp_forward(x, params, activation)
    y_pred = jax.block_until_ready(y_pred)

    # Sanity checks: shape, finiteness, rows sum to 1 (softmax), and match
    # against a pure-JAX f32 reference (loose tol for bf16 layer-1 input).
    assert y_pred.shape == (B, 10)
    assert bool(jnp.all(jnp.isfinite(y_pred)))
    assert bool(jnp.allclose(jnp.sum(y_pred, axis=1), 1.0, atol=1e-2))

    y_ref = _ref_forward(x, params, activation)
    assert bool(jnp.allclose(y_pred, y_ref, atol=3e-2)), "mismatch vs reference"

    print("KERNEL_OK")
</pallas_src>

<mosaic_0001>
module attributes {stable_mosaic.version = 11 : i64} {
  func.func @kernel(%arg0: i32, %arg1: memref<16x784xbf16, #tpu.memory_space<vmem>>, %arg2: memref<784x28xbf16, #tpu.memory_space<vmem>>, %arg3: memref<1x28xf32, #tpu.memory_space<vmem>>, %arg4: memref<28x32xf32, #tpu.memory_space<vmem>>, %arg5: memref<1x32xf32, #tpu.memory_space<vmem>>, %arg6: memref<32x28xf32, #tpu.memory_space<vmem>>, %arg7: memref<1x28xf32, #tpu.memory_space<vmem>>, %arg8: memref<28x10xf32, #tpu.memory_space<vmem>>, %arg9: memref<1x10xf32, #tpu.memory_space<vmem>>, %arg10: memref<16x10xf32, #tpu.memory_space<vmem>>) attributes {dimension_semantics = [#tpu.dimension_semantics<parallel>], iteration_bounds = array<i64: 1>, scalar_prefetch = 0 : i64, scratch_operands = 0 : i64, tpu.core_type = #tpu.core_type<tc>, window_params = [{transform_indices = @transform_0, window_bounds = array<i64: 16, 784>}, {pipeline_mode = #tpu.pipeline_mode<synchronous>, transform_indices = @transform_1, window_bounds = array<i64: 784, 28>}, {pipeline_mode = #tpu.pipeline_mode<synchronous>, transform_indices = @transform_2, window_bounds = array<i64: 1, 28>}, {pipeline_mode = #tpu.pipeline_mode<synchronous>, transform_indices = @transform_3, window_bounds = array<i64: 28, 32>}, {pipeline_mode = #tpu.pipeline_mode<synchronous>, transform_indices = @transform_4, window_bounds = array<i64: 1, 32>}, {pipeline_mode = #tpu.pipeline_mode<synchronous>, transform_indices = @transform_5, window_bounds = array<i64: 32, 28>}, {pipeline_mode = #tpu.pipeline_mode<synchronous>, transform_indices = @transform_6, window_bounds = array<i64: 1, 28>}, {pipeline_mode = #tpu.pipeline_mode<synchronous>, transform_indices = @transform_7, window_bounds = array<i64: 28, 10>}, {pipeline_mode = #tpu.pipeline_mode<synchronous>, transform_indices = @transform_8, window_bounds = array<i64: 1, 10>}, {transform_indices = @transform_9, window_bounds = array<i64: 16, 10>}]} {
    %c0 = arith.constant 0 : index
    %c0_0 = arith.constant 0 : index
    %0 = vector.load %arg1[%c0, %c0_0] : memref<16x784xbf16, #tpu.memory_space<vmem>>, vector<16x784xbf16>
    %c0_1 = arith.constant 0 : index
    %c0_2 = arith.constant 0 : index
    %1 = vector.load %arg2[%c0_1, %c0_2] : memref<784x28xbf16, #tpu.memory_space<vmem>>, vector<784x28xbf16>
    %cst = arith.constant dense<0.000000e+00> : vector<16x28xf32>
    %2 = tpu.matmul %0, %1, %cst {dimension_numbers = #tpu.dot_dimension_numbers<[1], [0], [0], [1], [0, 0, 1, 1], [], []>} : vector<16x784xbf16>, vector<784x28xbf16>, vector<16x28xf32> -> vector<16x28xf32>
    %c0_3 = arith.constant 0 : index
    %c0_4 = arith.constant 0 : index
    %3 = vector.load %arg3[%c0_3, %c0_4] : memref<1x28xf32, #tpu.memory_space<vmem>>, vector<1x28xf32>
    %4 = vector.broadcast %3 : vector<1x28xf32> to vector<16x28xf32>
    %5 = arith.addf %2, %4 : vector<16x28xf32>
    %cst_5 = arith.constant 0.000000e+00 : f32
    %6 = vector.broadcast %cst_5 : f32 to vector<16x28xf32>
    %7 = arith.maximumf %5, %6 : vector<16x28xf32>
    %c0_6 = arith.constant 0 : index
    %c0_7 = arith.constant 0 : index
    %8 = vector.load %arg4[%c0_6, %c0_7] : memref<28x32xf32, #tpu.memory_space<vmem>>, vector<28x32xf32>
    %c0_8 = arith.constant 0 : index
    %c0_9 = arith.constant 0 : index
    %9 = vector.load %arg5[%c0_8, %c0_9] : memref<1x32xf32, #tpu.memory_space<vmem>>, vector<1x32xf32>
    %cst_10 = arith.constant dense<0.000000e+00> : vector<16x32xf32>
    %10 = tpu.matmul %7, %8, %cst_10 {dimension_numbers = #tpu.dot_dimension_numbers<[1], [0], [0], [1], [0, 0, 1, 1], [], []>} : vector<16x28xf32>, vector<28x32xf32>, vector<16x32xf32> -> vector<16x32xf32>
    %11 = vector.broadcast %9 : vector<1x32xf32> to vector<16x32xf32>
    %12 = arith.addf %10, %11 : vector<16x32xf32>
    %cst_11 = arith.constant 0.000000e+00 : f32
    %13 = vector.broadcast %cst_11 : f32 to vector<16x32xf32>
    %14 = arith.maximumf %12, %13 : vector<16x32xf32>
    %c0_12 = arith.constant 0 : index
    %c0_13 = arith.constant 0 : index
    %15 = vector.load %arg6[%c0_12, %c0_13] : memref<32x28xf32, #tpu.memory_space<vmem>>, vector<32x28xf32>
    %c0_14 = arith.constant 0 : index
    %c0_15 = arith.constant 0 : index
    %16 = vector.load %arg7[%c0_14, %c0_15] : memref<1x28xf32, #tpu.memory_space<vmem>>, vector<1x28xf32>
    %cst_16 = arith.constant dense<0.000000e+00> : vector<16x28xf32>
    %17 = tpu.matmul %14, %15, %cst_16 {dimension_numbers = #tpu.dot_dimension_numbers<[1], [0], [0], [1], [0, 0, 1, 1], [], []>} : vector<16x32xf32>, vector<32x28xf32>, vector<16x28xf32> -> vector<16x28xf32>
    %18 = vector.broadcast %16 : vector<1x28xf32> to vector<16x28xf32>
    %19 = arith.addf %17, %18 : vector<16x28xf32>
    %cst_17 = arith.constant 0.000000e+00 : f32
    %20 = vector.broadcast %cst_17 : f32 to vector<16x28xf32>
    %21 = arith.maximumf %19, %20 : vector<16x28xf32>
    %c0_18 = arith.constant 0 : index
    %c0_19 = arith.constant 0 : index
    %22 = vector.load %arg8[%c0_18, %c0_19] : memref<28x10xf32, #tpu.memory_space<vmem>>, vector<28x10xf32>
    %c0_20 = arith.constant 0 : index
    %c0_21 = arith.constant 0 : index
    %23 = vector.load %arg9[%c0_20, %c0_21] : memref<1x10xf32, #tpu.memory_space<vmem>>, vector<1x10xf32>
    %cst_22 = arith.constant dense<0.000000e+00> : vector<16x10xf32>
    %24 = tpu.matmul %21, %22, %cst_22 {dimension_numbers = #tpu.dot_dimension_numbers<[1], [0], [0], [1], [0, 0, 1, 1], [], []>} : vector<16x28xf32>, vector<28x10xf32>, vector<16x10xf32> -> vector<16x10xf32>
    %25 = vector.broadcast %23 : vector<1x10xf32> to vector<16x10xf32>
    %26 = arith.addf %24, %25 : vector<16x10xf32>
    %cst_23 = arith.constant dense<0xFF800000> : vector<16xf32>
    %27 = vector.multi_reduction <maximumf>, %26, %cst_23 [1] : vector<16x10xf32> to vector<16xf32>
    %28 = vector.shape_cast %27 : vector<16xf32> to vector<16x1xf32>
    %29 = vector.broadcast %28 : vector<16x1xf32> to vector<16x10xf32>
    %30 = arith.subf %26, %29 : vector<16x10xf32>
    %31 = math.exp %30 : vector<16x10xf32>
    %cst_24 = arith.constant dense<0.000000e+00> : vector<16xf32>
    %32 = vector.multi_reduction <add>, %31, %cst_24 [1] : vector<16x10xf32> to vector<16xf32>
    %33 = vector.shape_cast %32 : vector<16xf32> to vector<16x1xf32>
    %34 = tpu.reciprocal %33 {approx = true} : vector<16x1xf32> -> vector<16x1xf32>
    %35 = vector.broadcast %34 : vector<16x1xf32> to vector<16x10xf32>
    %36 = arith.mulf %31, %35 : vector<16x10xf32>
    %c0_25 = arith.constant 0 : index
    %c0_26 = arith.constant 0 : index
    %37 = vector.load %arg10[%c0_25, %c0_26] : memref<16x10xf32, #tpu.memory_space<vmem>>, vector<16x10xf32>
    tpu.vector_store %arg10[%c0_25, %c0_26], %36 {strides = array<i32>} : memref<16x10xf32, #tpu.memory_space<vmem>>, vector<16x10xf32>,
    return
  }
  func.func @transform_0(%arg0: i32) -> (i32, i32) {
    %c0_i32 = arith.constant 0 : i32
    %c0_i32_0 = arith.constant 0 : i32
    return %arg0, %c0_i32 : i32, i32
  }
  func.func @transform_1(%arg0: i32) -> (i32, i32) {
    %c0_i32 = arith.constant 0 : i32
    %c0_i32_0 = arith.constant 0 : i32
    %c0_i32_1 = arith.constant 0 : i32
    return %c0_i32, %c0_i32_0 : i32, i32
  }
  func.func @transform_2(%arg0: i32) -> (i32, i32) {
    %c0_i32 = arith.constant 0 : i32
    %c0_i32_0 = arith.constant 0 : i32
    %c0_i32_1 = arith.constant 0 : i32
    return %c0_i32, %c0_i32_0 : i32, i32
  }
  func.func @transform_3(%arg0: i32) -> (i32, i32) {
    %c0_i32 = arith.constant 0 : i32
    %c0_i32_0 = arith.constant 0 : i32
    %c0_i32_1 = arith.constant 0 : i32
    return %c0_i32, %c0_i32_0 : i32, i32
  }
  func.func @transform_4(%arg0: i32) -> (i32, i32) {
    %c0_i32 = arith.constant 0 : i32
    %c0_i32_0 = arith.constant 0 : i32
    %c0_i32_1 = arith.constant 0 : i32
    return %c0_i32, %c0_i32_0 : i32, i32
  }
  func.func @transform_5(%arg0: i32) -> (i32, i32) {
    %c0_i32 = arith.constant 0 : i32
    %c0_i32_0 = arith.constant 0 : i32
    %c0_i32_1 = arith.constant 0 : i32
    return %c0_i32, %c0_i32_0 : i32, i32
  }
  func.func @transform_6(%arg0: i32) -> (i32, i32) {
    %c0_i32 = arith.constant 0 : i32
    %c0_i32_0 = arith.constant 0 : i32
    %c0_i32_1 = arith.constant 0 : i32
    return %c0_i32, %c0_i32_0 : i32, i32
  }
  func.func @transform_7(%arg0: i32) -> (i32, i32) {
    %c0_i32 = arith.constant 0 : i32
    %c0_i32_0 = arith.constant 0 : i32
    %c0_i32_1 = arith.constant 0 : i32
    return %c0_i32, %c0_i32_0 : i32, i32
  }
  func.func @transform_8(%arg0: i32) -> (i32, i32) {
    %c0_i32 = arith.constant 0 : i32
    %c0_i32_0 = arith.constant 0 : i32
    %c0_i32_1 = arith.constant 0 : i32
    return %c0_i32, %c0_i32_0 : i32, i32
  }
  func.func @transform_9(%arg0: i32) -> (i32, i32) {
    %c0_i32 = arith.constant 0 : i32
    %c0_i32_0 = arith.constant 0 : i32
    return %arg0, %c0_i32 : i32, i32
  }
}

</mosaic_0001>

<llo_original>
// kernel: tpu_custom_call.1
$region0: #{tpu_custom_call.1}
  #allocation0 [shape = 'u32[]', space=smem, size = 0x4, offset = 0x4, fixed_abs, tag = 'smem constant byte address 0x4 - core index']
  #allocation1 [shape = 'u32[144,128]{1,0:T(1,128)}', space=vmem, size = 0x12000, scoped, tag = 'internal scratch']
  %s0 = inlined_call_operand.vmem [shape: bf16[16,784], index: 0, kind: input, shape index: {}]
  %s1 = inlined_call_operand.vmem [shape: bf16[784,28], index: 1, kind: input, shape index: {}]
  %s2 = inlined_call_operand.vmem [shape: f32[1,28], index: 2, kind: input, shape index: {}]
  %s3 = inlined_call_operand.vmem [shape: f32[28,32], index: 3, kind: input, shape index: {}]
  %s4 = inlined_call_operand.vmem [shape: f32[1,32], index: 4, kind: input, shape index: {}]
  %s5 = inlined_call_operand.vmem [shape: f32[32,28], index: 5, kind: input, shape index: {}]
  %s6 = inlined_call_operand.vmem [shape: f32[1,28], index: 6, kind: input, shape index: {}]
  %s7 = inlined_call_operand.vmem [shape: f32[28,10], index: 7, kind: input, shape index: {}]
  %s8 = inlined_call_operand.vmem [shape: f32[1,10], index: 8, kind: input, shape index: {}]
  %s9 = inlined_call_operand.hbm [shape: f32[16,10], index: 9, kind: output, shape index: {}]
  %s10 = sld [smem:[#allocation0]]
  $region46: #{tpu_custom_call.1} parent=0
    _
  %s12 = ssub.s32 1, %s10
  %s13 = scalar_select 0, %s12, %s10
  $region1: #{tpu_custom_call.1} parent=0
    #allocation2 [shape = 'u8[8192]{0}', space=vmem, size = 0x2000, scoped, tag = 'output window, operand 0, single buffered']
    #allocation3 [shape = 's32[1]{0}', space=sflag, size = 0x4, scoped, tag = 'scoped memory for tpu_custom_call.1']
    %14 = vsyncpa [#allocation3], 0
    // Predicated region
    $region2: #{tpu_custom_call.1} parent=1 // pred_check
      _
    $region3: #{tpu_custom_call.1} parent=1 // pred_check_branch
      %16 = sbr.rel (0) target = $region5
    $region4: #{tpu_custom_call.1} parent=1 // pred_region
      _
    $region5: #{tpu_custom_call.1} parent=1 // pred_fallthru
      _
    // Predicated region
    $region6: #{tpu_custom_call.1} parent=1 // pred_check
      _
    $region7: #{tpu_custom_call.1} parent=1 // pred_check_branch
      %18 = sbr.rel (0) target = $region9
    $region8: #{tpu_custom_call.1} parent=1 // pred_region
      _
    $region9: #{tpu_custom_call.1} parent=1 // pred_fallthru
      _
    // Predicated region
    $region10: #{tpu_custom_call.1} parent=1 // pred_check
      _
    $region11: #{tpu_custom_call.1} parent=1 // pred_check_branch
      %20 = sbr.rel (0) target = $region13
    $region12: #{tpu_custom_call.1} parent=1 // pred_region
      _
    $region13: #{tpu_custom_call.1} parent=1 // pred_fallthru
      _
    // Predicated region
    $region14: #{tpu_custom_call.1} parent=1 // pred_check
      _
    $region15: #{tpu_custom_call.1} parent=1 // pred_check_branch
      %22 = sbr.rel (0) target = $region17
    $region16: #{tpu_custom_call.1} parent=1 // pred_region
      _
    $region17: #{tpu_custom_call.1} parent=1 // pred_fallthru
      _
    // Predicated region
    $region18: #{tpu_custom_call.1} parent=1 // pred_check
      _
    $region19: #{tpu_custom_call.1} parent=1 // pred_check_branch
      %24 = sbr.rel (0) target = $region21
    $region20: #{tpu_custom_call.1} parent=1 // pred_region
      _
    $region21: #{tpu_custom_call.1} parent=1 // pred_fallthru
      _
    // Predicated region
    $region22: #{tpu_custom_call.1} parent=1 // pred_check
      _
    $region23: #{tpu_custom_call.1} parent=1 // pred_check_branch
      %26 = sbr.rel (0) target = $region25
    $region24: #{tpu_custom_call.1} parent=1 // pred_region
      _
    $region25: #{tpu_custom_call.1} parent=1 // pred_fallthru
      _
    // Predicated region
    $region26: #{tpu_custom_call.1} parent=1 // pred_check
      _
    $region27: #{tpu_custom_call.1} parent=1 // pred_check_branch
      %28 = sbr.rel (0) target = $region29
    $region28: #{tpu_custom_call.1} parent=1 // pred_region
      _
    $region29: #{tpu_custom_call.1} parent=1 // pred_fallthru
      _
    // Predicated region
    $region30: #{tpu_custom_call.1} parent=1 // pred_check
      _
    $region31: #{tpu_custom_call.1} parent=1 // pred_check_branch
      %30 = sbr.rel (0) target = $region33
    $region32: #{tpu_custom_call.1} parent=1 // pred_region
      _
    $region33: #{tpu_custom_call.1} parent=1 // pred_fallthru
      _
    // Predicated region
    $region34: #{tpu_custom_call.1} parent=1 // pred_check
      _
    $region35: #{tpu_custom_call.1} parent=1 // pred_check_branch
      %32 = sbr.rel (0) target = $region37
    $region36: #{tpu_custom_call.1} parent=1 // pred_region
      _
    $region37: #{tpu_custom_call.1} parent=1 // pred_fallthru
      _
    %v34 = vld [vmem:[%s0] sm:$0xff]
    %v35 = vld [vmem:[%s0 + $0x8] sm:$0xff]
    %v36 = vld [vmem:[%s0 + $0x10] sm:$0xff]
    %v37 = vld [vmem:[%s0 + $0x18] sm:$0xf]
    %v38 = vld [vmem:[%s0 + $0x1c] sm:$0xff]
    %v39 = vld [vmem:[%s0 + $0x24] sm:$0xff]
    %v40 = vld [vmem:[%s0 + $0x2c] sm:$0xff]
    %v41 = vld [vmem:[%s0 + $0x34] sm:$0xf]
    %v42 = vld [vmem:[%s1] sm:$0xf]
    %v43 = vld [vmem:[%s1 + $0x4] sm:$0xf]
    %v44 = vld [vmem:[%s1 + $0x8] sm:$0xf]
    %v45 = vld [vmem:[%s1 + $0xc] sm:$0xf]
    %v46 = vld [vmem:[%s1 + $0x10] sm:$0xf]
    %v47 = vld [vmem:[%s1 + $0x14] sm:$0xf]
    %v48 = vld [vmem:[%s1 + $0x18] sm:$0xf]
    %v49 = vld [vmem:[%s1 + $0x1c] sm:$0xf]
    %v50 = vld [vmem:[%s1 + $0x20] sm:$0xf]
    %v51 = vld [vmem:[%s1 + $0x24] sm:$0xf]
    %v52 = vld [vmem:[%s1 + $0x28] sm:$0xf]
    %v53 = vld [vmem:[%s1 + $0x2c] sm:$0xf]
    %v54 = vld [vmem:[%s1 + $0x30] sm:$0xf]
    %v55 = vld [vmem:[%s1 + $0x34] sm:$0xf]
    %v56 = vld [vmem:[%s1 + $0x38] sm:$0xf]
    %v57 = vld [vmem:[%s1 + $0x3c] sm:$0xf]
    %v58 = vld [vmem:[%s1 + $0x40] sm:$0xf]
    %v59 = vld [vmem:[%s1 + $0x44] sm:$0xf]
    %v60 = vld [vmem:[%s1 + $0x48] sm:$0xf]
    %v61 = vld [vmem:[%s1 + $0x4c] sm:$0xf]
    %v62 = vld [vmem:[%s1 + $0x50] sm:$0xf]
    %v63 = vld [vmem:[%s1 + $0x54] sm:$0xf]
    %v64 = vld [vmem:[%s1 + $0x58] sm:$0xf]
    %v65 = vld [vmem:[%s1 + $0x5c] sm:$0xf]
    %v66 = vld [vmem:[%s1 + $0x60] sm:$0xf]
    %v67 = vld [vmem:[%s1 + $0x64] sm:$0xf]
    %v68 = vld [vmem:[%s1 + $0x68] sm:$0xf]
    %v69 = vld [vmem:[%s1 + $0x6c] sm:$0xf]
    %v70 = vld [vmem:[%s1 + $0x70] sm:$0xf]
    %v71 = vld [vmem:[%s1 + $0x74] sm:$0xf]
    %v72 = vld [vmem:[%s1 + $0x78] sm:$0xf]
    %v73 = vld [vmem:[%s1 + $0x7c] sm:$0xf]
    %v74 = vld [vmem:[%s1 + $0x80] sm:$0xf]
    %v75 = vld [vmem:[%s1 + $0x84] sm:$0xf]
    %v76 = vld [vmem:[%s1 + $0x88] sm:$0xf]
    %v77 = vld [vmem:[%s1 + $0x8c] sm:$0xf]
    %v78 = vld [vmem:[%s1 + $0x90] sm:$0xf]
    %v79 = vld [vmem:[%s1 + $0x94] sm:$0xf]
    %v80 = vld [vmem:[%s1 + $0x98] sm:$0xf]
    %v81 = vld [vmem:[%s1 + $0x9c] sm:$0xf]
    %v82 = vld [vmem:[%s1 + $0xa0] sm:$0xf]
    %v83 = vld [vmem:[%s1 + $0xa4] sm:$0xf]
    %v84 = vld [vmem:[%s1 + $0xa8] sm:$0xf]
    %v85 = vld [vmem:[%s1 + $0xac] sm:$0xf]
    %v86 = vld [vmem:[%s1 + $0xb0] sm:$0xf]
    %v87 = vld [vmem:[%s1 + $0xb4] sm:$0xf]
    %v88 = vld [vmem:[%s1 + $0xb8] sm:$0xf]
    %v89 = vld [vmem:[%s1 + $0xbc] sm:$0xf]
    %v90 = vld [vmem:[%s1 + $0xc0] sm:$0xf]
    %v91 = vld [vmem:[%s1 + $0xc4] sm:$0xf]
    %v92 = vld [vmem:[%s1 + $0xc8] sm:$0xf]
    %v93 = vld [vmem:[%s1 + $0xcc] sm:$0xf]
    %v94 = vld [vmem:[%s1 + $0xd0] sm:$0xf]
    %v95 = vld [vmem:[%s1 + $0xd4] sm:$0xf]
    %v96 = vld [vmem:[%s1 + $0xd8] sm:$0xf]
    %v97 = vld [vmem:[%s1 + $0xdc] sm:$0xf]
    %v98 = vld [vmem:[%s1 + $0xe0] sm:$0xf]
    %v99 = vld [vmem:[%s1 + $0xe4] sm:$0xf]
    %v100 = vld [vmem:[%s1 + $0xe8] sm:$0xf]
    %v101 = vld [vmem:[%s1 + $0xec] sm:$0xf]
    %v102 = vld [vmem:[%s1 + $0xf0] sm:$0xf]
    %v103 = vld [vmem:[%s1 + $0xf4] sm:$0xf]
    %v104 = vld [vmem:[%s1 + $0xf8] sm:$0xf]
    %v105 = vld [vmem:[%s1 + $0xfc] sm:$0xf]
    %v106 = vld [vmem:[%s1 + $0x100] sm:$0xf]
    %v107 = vld [vmem:[%s1 + $0x104] sm:$0xf]
    %v108 = vld [vmem:[%s1 + $0x108] sm:$0xf]
    %v109 = vld [vmem:[%s1 + $0x10c] sm:$0xf]
    %v110 = vld [vmem:[%s1 + $0x110] sm:$0xf]
    %v111 = vld [vmem:[%s1 + $0x114] sm:$0xf]
    %v112 = vld [vmem:[%s1 + $0x118] sm:$0xf]
    %v113 = vld [vmem:[%s1 + $0x11c] sm:$0xf]
    %v114 = vld [vmem:[%s1 + $0x120] sm:$0xf]
    %v115 = vld [vmem:[%s1 + $0x124] sm:$0xf]
    %v116 = vld [vmem:[%s1 + $0x128] sm:$0xf]
    %v117 = vld [vmem:[%s1 + $0x12c] sm:$0xf]
    %v118 = vld [vmem:[%s1 + $0x130] sm:$0xf]
    %v119 = vld [vmem:[%s1 + $0x134] sm:$0xf]
    %v120 = vld [vmem:[%s1 + $0x138] sm:$0xf]
    %v121 = vld [vmem:[%s1 + $0x13c] sm:$0xf]
    %v122 = vld [vmem:[%s1 + $0x140] sm:$0xf]
    %v123 = vld [vmem:[%s1 + $0x144] sm:$0xf]
    %v124 = vld [vmem:[%s1 + $0x148] sm:$0xf]
    %v125 = vld [vmem:[%s1 + $0x14c] sm:$0xf]
    %v126 = vld [vmem:[%s1 + $0x150] sm:$0xf]
    %v127 = vld [vmem:[%s1 + $0x154] sm:$0xf]
    %v128 = vld [vmem:[%s1 + $0x158] sm:$0xf]
    %v129 = vld [vmem:[%s1 + $0x15c] sm:$0xf]
    %v130 = vld [vmem:[%s1 + $0x160] sm:$0xf]
    %v131 = vld [vmem:[%s1 + $0x164] sm:$0xf]
    %v132 = vld [vmem:[%s1 + $0x168] sm:$0xf]
    %v133 = vld [vmem:[%s1 + $0x16c] sm:$0xf]
    %v134 = vld [vmem:[%s1 + $0x170] sm:$0xf]
    %v135 = vld [vmem:[%s1 + $0x174] sm:$0xf]
    %v136 = vld [vmem:[%s1 + $0x178] sm:$0xf]
    %v137 = vld [vmem:[%s1 + $0x17c] sm:$0xf]
    %v138 = vld [vmem:[%s1 + $0x180] sm:$0xf]
    %v139 = vld [vmem:[%s1 + $0x184] sm:$0xf]
    %v140 = vld [vmem:[%s2] sm:$0x1]
    %v142 = vlaneseq
    %v143 = vshrl.u32 %v142, 7
    %v144 = vsub.s32 0, %v143
    %v145 = vrot.slane %v140, %v144
    %v155 = vunpack.c.l.b16 %v34
    %v156 = vunpack.c.h.b16 %v34
    %v157 = vunpack.c.l.b16 %v35
    %v158 = vunpack.c.h.b16 %v35
    %v159 = vunpack.c.l.b16 %v36
    %v160 = vunpack.c.h.b16 %v36
    %v161 = vunpack.c.l.b16 %v37
    %v162 = vunpack.c.l.b16 %v38
    %v163 = vunpack.c.h.b16 %v38
    %v164 = vunpack.c.l.b16 %v39
    %v165 = vunpack.c.h.b16 %v39
    %v166 = vunpack.c.l.b16 %v40
    %v167 = vunpack.c.h.b16 %v40
    %v168 = vunpack.c.l.b16 %v41
    %v169 = vpack.c.b16 %v162, %v155
    %v170 = vpack.c.b16 %v163, %v156
    %v171 = vpack.c.b16 %v164, %v157
    %v172 = vpack.c.b16 %v165, %v158
    %v173 = vpack.c.b16 %v166, %v159
    %v174 = vpack.c.b16 %v167, %v160
    %v175 = vpack.c.b16 %v168, %v161
    %v280 = vunpack.c.l.b16 %v42
    %v281 = vunpack.c.l.b16 %v43
    %v282 = vunpack.c.l.b16 %v44
    %v283 = vunpack.c.l.b16 %v45
    %v284 = vunpack.c.l.b16 %v46
    %v285 = vunpack.c.l.b16 %v47
    %v286 = vunpack.c.l.b16 %v48
    %v287 = vunpack.c.l.b16 %v49
    %v288 = vunpack.c.l.b16 %v50
    %v289 = vunpack.c.l.b16 %v51
    %v290 = vunpack.c.l.b16 %v52
    %v291 = vunpack.c.l.b16 %v53
    %v292 = vunpack.c.l.b16 %v54
    %v293 = vunpack.c.l.b16 %v55
    %v294 = vunpack.c.l.b16 %v56
    %v295 = vunpack.c.l.b16 %v57
    %v296 = vunpack.c.l.b16 %v58
    %v297 = vunpack.c.l.b16 %v59
    %v298 = vunpack.c.l.b16 %v60
    %v299 = vunpack.c.l.b16 %v61
    %v300 = vunpack.c.l.b16 %v62
    %v301 = vunpack.c.l.b16 %v63
    %v302 = vunpack.c.l.b16 %v64
    %v303 = vunpack.c.l.b16 %v65
    %v304 = vunpack.c.l.b16 %v66
    %v305 = vunpack.c.l.b16 %v67
    %v306 = vunpack.c.l.b16 %v68
    %v307 = vunpack.c.l.b16 %v69
    %v308 = vunpack.c.l.b16 %v70
    %v309 = vunpack.c.l.b16 %v71
    %v310 = vunpack.c.l.b16 %v72
    %v311 = vunpack.c.l.b16 %v73
    %v312 = vunpack.c.l.b16 %v74
    %v313 = vunpack.c.l.b16 %v75
    %v314 = vunpack.c.l.b16 %v76
    %v315 = vunpack.c.l.b16 %v77
    %v316 = vunpack.c.l.b16 %v78
    %v317 = vunpack.c.l.b16 %v79
    %v318 = vunpack.c.l.b16 %v80
    %v319 = vunpack.c.l.b16 %v81
    %v320 = vunpack.c.l.b16 %v82
    %v321 = vunpack.c.l.b16 %v83
    %v322 = vunpack.c.l.b16 %v84
    %v323 = vunpack.c.l.b16 %v85
    %v324 = vunpack.c.l.b16 %v86
    %v325 = vunpack.c.l.b16 %v87
    %v326 = vunpack.c.l.b16 %v88
    %v327 = vunpack.c.l.b16 %v89
    %v328 = vunpack.c.l.b16 %v90
    %v329 = vunpack.c.l.b16 %v91
    %v330 = vunpack.c.l.b16 %v92
    %v331 = vunpack.c.l.b16 %v93
    %v332 = vunpack.c.l.b16 %v94
    %v333 = vunpack.c.l.b16 %v95
    %v334 = vunpack.c.l.b16 %v96
    %v335 = vunpack.c.l.b16 %v97
    %v336 = vunpack.c.l.b16 %v98
    %v337 = vunpack.c.l.b16 %v99
    %v338 = vunpack.c.l.b16 %v100
    %v339 = vunpack.c.l.b16 %v101
    %v340 = vunpack.c.l.b16 %v102
    %v341 = vunpack.c.l.b16 %v103
    %v342 = vunpack.c.l.b16 %v104
    %v343 = vunpack.c.l.b16 %v105
    %v344 = vunpack.c.l.b16 %v106
    %v345 = vunpack.c.l.b16 %v107
    %v346 = vunpack.c.l.b16 %v108
    %v347 = vunpack.c.l.b16 %v109
    %v348 = vunpack.c.l.b16 %v110
    %v349 = vunpack.c.l.b16 %v111
    %v350 = vunpack.c.l.b16 %v112
    %v351 = vunpack.c.l.b16 %v113
    %v352 = vunpack.c.l.b16 %v114
    %v353 = vunpack.c.l.b16 %v115
    %v354 = vunpack.c.l.b16 %v116
    %v355 = vunpack.c.l.b16 %v117
    %v356 = vunpack.c.l.b16 %v118
    %v357 = vunpack.c.l.b16 %v119
    %v358 = vunpack.c.l.b16 %v120
    %v359 = vunpack.c.l.b16 %v121
    %v360 = vunpack.c.l.b16 %v122
    %v361 = vunpack.c.l.b16 %v123
    %v362 = vunpack.c.l.b16 %v124
    %v363 = vunpack.c.l.b16 %v125
    %v364 = vunpack.c.l.b16 %v126
    %v365 = vunpack.c.l.b16 %v127
    %v366 = vunpack.c.l.b16 %v128
    %v367 = vunpack.c.l.b16 %v129
    %v368 = vunpack.c.l.b16 %v130
    %v369 = vunpack.c.l.b16 %v131
    %v370 = vunpack.c.l.b16 %v132
    %v371 = vunpack.c.l.b16 %v133
    %v372 = vunpack.c.l.b16 %v134
    %v373 = vunpack.c.l.b16 %v135
    %v374 = vunpack.c.l.b16 %v136
    %v375 = vunpack.c.l.b16 %v137
    %v376 = vunpack.c.l.b16 %v138
    %v377 = vunpack.c.l.b16 %v139
    %v378 = vpack.c.b16 %v281, %v280
    %v379 = vpack.c.b16 %v283, %v282
    %v380 = vpack.c.b16 %v285, %v284
    %v381 = vpack.c.b16 %v287, %v286
    %v382 = vpack.c.b16 %v289, %v288
    %v383 = vpack.c.b16 %v291, %v290
    %v384 = vpack.c.b16 %v293, %v292
    %v385 = vpack.c.b16 %v295, %v294
    %v386 = vpack.c.b16 %v297, %v296
    %v387 = vpack.c.b16 %v299, %v298
    %v388 = vpack.c.b16 %v301, %v300
    %v389 = vpack.c.b16 %v303, %v302
    %v390 = vpack.c.b16 %v305, %v304
    %v391 = vpack.c.b16 %v307, %v306
    %v392 = vpack.c.b16 %v309, %v308
    %v393 = vpack.c.b16 %v311, %v310
    %v394 = vpack.c.b16 %v313, %v312
    %v395 = vpack.c.b16 %v315, %v314
    %v396 = vpack.c.b16 %v317, %v316
    %v397 = vpack.c.b16 %v319, %v318
    %v398 = vpack.c.b16 %v321, %v320
    %v399 = vpack.c.b16 %v323, %v322
    %v400 = vpack.c.b16 %v325, %v324
    %v401 = vpack.c.b16 %v327, %v326
    %v402 = vpack.c.b16 %v329, %v328
    %v403 = vpack.c.b16 %v331, %v330
    %v404 = vpack.c.b16 %v333, %v332
    %v405 = vpack.c.b16 %v335, %v334
    %v406 = vpack.c.b16 %v337, %v336
    %v407 = vpack.c.b16 %v339, %v338
    %v408 = vpack.c.b16 %v341, %v340
    %v409 = vpack.c.b16 %v343, %v342
    %v410 = vpack.c.b16 %v345, %v344
    %v411 = vpack.c.b16 %v347, %v346
    %v412 = vpack.c.b16 %v349, %v348
    %v413 = vpack.c.b16 %v351, %v350
    %v414 = vpack.c.b16 %v353, %v352
    %v415 = vpack.c.b16 %v355, %v354
    %v416 = vpack.c.b16 %v357, %v356
    %v417 = vpack.c.b16 %v359, %v358
    %v418 = vpack.c.b16 %v361, %v360
    %v419 = vpack.c.b16 %v363, %v362
    %v420 = vpack.c.b16 %v365, %v364
    %v421 = vpack.c.b16 %v367, %v366
    %v422 = vpack.c.b16 %v369, %v368
    %v423 = vpack.c.b16 %v371, %v370
    %v424 = vpack.c.b16 %v373, %v372
    %v425 = vpack.c.b16 %v375, %v374
    %v426 = vpack.c.b16 %v377, %v376
    %vm476 = vcmask 130048
    %v478 = vsel %vm476, %v175, 0
    %480 = vmatprep.subr.bf16.mxu0 0
    %481 = vmatpush1.bf16.msra.mxu0 %v385
    %482 = vmatprep.subr.bf16.mxu0 0
    %483 = vmatpush1.bf16.msra.mxu0 %v384
    %484 = vmatprep.subr.bf16.mxu0 0
    %485 = vmatpush1.bf16.msra.mxu0 %v383
    %486 = vmatprep.subr.bf16.mxu0 0
    %487 = vmatpush1.bf16.msra.mxu0 %v382
    %488 = vmatprep.subr.bf16.mxu0 0
    %489 = vmatpush1.bf16.msra.mxu0 %v381
    %490 = vmatprep.subr.bf16.mxu0 0
    %491 = vmatpush1.bf16.msra.mxu0 %v380
    %492 = vmatprep.subr.bf16.mxu0 0
    %493 = vmatpush1.bf16.msra.mxu0 %v379
    %494 = vmatprep.subr.bf16.mxu0 0
    %495 = vmatpush1.bf16.msra.mxu0 %v378
    %496 = vmatprep.subr.bf16.mxu0 0
    %497 = vmatpush2.bf16.msra.mxu0 %v393
    %498 = vmatprep.subr.bf16.mxu0 0
    %499 = vmatpush2.bf16.msra.mxu0 %v392
    %500 = vmatprep.subr.bf16.mxu0 0
    %501 = vmatpush2.bf16.msra.mxu0 %v391
    %502 = vmatprep.subr.bf16.mxu0 0
    %503 = vmatpush2.bf16.msra.mxu0 %v390
    %504 = vmatprep.subr.bf16.mxu0 0
    %505 = vmatpush2.bf16.msra.mxu0 %v389
    %506 = vmatprep.subr.bf16.mxu0 0
    %507 = vmatpush2.bf16.msra.mxu0 %v388
    %508 = vmatprep.subr.bf16.mxu0 0
    %509 = vmatpush2.bf16.msra.mxu0 %v387
    %510 = vmatprep.subr.bf16.mxu0 0
    %511 = vmatpush2.bf16.msra.mxu0 %v386
    %512 = vmatprep.mubr.bf16.mxu0 %v170
    %513 = vmatmul.mubr.bf16.gmra.mxu0 %v169
    %v514 = vpop.f32.mrf.mxu0
    %v515 = vadd.f32 %v145, %v514
    %v516 = vpop.f32.mrf.mxu0
    %v517 = vpop.f32.mrf.mxu0
    %v518 = vadd.f32 %v145, %v517
    %v519 = vpop.f32.mrf.mxu0
    %520 = vdwg.mxu0
    %521 = vmatprep.subr.bf16.mxu0 0
    %522 = vmatpush1.bf16.msra.mxu0 %v401
    %523 = vmatprep.subr.bf16.mxu0 0
    %524 = vmatpush1.bf16.msra.mxu0 %v400
    %525 = vmatprep.subr.bf16.mxu0 0
    %526 = vmatpush1.bf16.msra.mxu0 %v399
    %527 = vmatprep.subr.bf16.mxu0 0
    %528 = vmatpush1.bf16.msra.mxu0 %v398
    %529 = vmatprep.subr.bf16.mxu0 0
    %530 = vmatpush1.bf16.msra.mxu0 %v397
    %531 = vmatprep.subr.bf16.mxu0 0
    %532 = vmatpush1.bf16.msra.mxu0 %v396
    %533 = vmatprep.subr.bf16.mxu0 0
    %534 = vmatpush1.bf16.msra.mxu0 %v395
    %535 = vmatprep.subr.bf16.mxu0 0
    %536 = vmatpush1.bf16.msra.mxu0 %v394
    %537 = vmatprep.subr.bf16.mxu0 0
    %538 = vmatpush2.bf16.msra.mxu0 %v409
    %539 = vmatprep.subr.bf16.mxu0 0
    %540 = vmatpush2.bf16.msra.mxu0 %v408
    %541 = vmatprep.subr.bf16.mxu0 0
    %542 = vmatpush2.bf16.msra.mxu0 %v407
    %543 = vmatprep.subr.bf16.mxu0 0
    %544 = vmatpush2.bf16.msra.mxu0 %v406
    %545 = vmatprep.subr.bf16.mxu0 0
    %546 = vmatpush2.bf16.msra.mxu0 %v405
    %547 = vmatprep.subr.bf16.mxu0 0
    %548 = vmatpush2.bf16.msra.mxu0 %v404
    %549 = vmatprep.subr.bf16.mxu0 0
    %550 = vmatpush2.bf16.msra.mxu0 %v403
    %551 = vmatprep.subr.bf16.mxu0 0
    %552 = vmatpush2.bf16.msra.mxu0 %v402
    %553 = vmatprep.mubr.bf16.mxu0 %v172
    %554 = vmatmul.mubr.bf16.gmra.mxu0 %v171
    %v555 = vpop.f32.mrf.mxu0
    %v556 = vadd.f32 %v515, %v555
    %v557 = vpop.f32.mrf.mxu0
    %v558 = vpop.f32.mrf.mxu0
    %v559 = vadd.f32 %v518, %v558
    %v560 = vpop.f32.mrf.mxu0
    %561 = vdwg.mxu0
    %562 = vmatprep.subr.bf16.mxu0 0
    %563 = vmatpush1.bf16.msra.mxu0 %v417
    %564 = vmatprep.subr.bf16.mxu0 0
    %565 = vmatpush1.bf16.msra.mxu0 %v416
    %566 = vmatprep.subr.bf16.mxu0 0
    %567 = vmatpush1.bf16.msra.mxu0 %v415
    %568 = vmatprep.subr.bf16.mxu0 0
    %569 = vmatpush1.bf16.msra.mxu0 %v414
    %570 = vmatprep.subr.bf16.mxu0 0
    %571 = vmatpush1.bf16.msra.mxu0 %v413
    %572 = vmatprep.subr.bf16.mxu0 0
    %573 = vmatpush1.bf16.msra.mxu0 %v412
    %574 = vmatprep.subr.bf16.mxu0 0
    %575 = vmatpush1.bf16.msra.mxu0 %v411
    %576 = vmatprep.subr.bf16.mxu0 0
    %577 = vmatpush1.bf16.msra.mxu0 %v410
    %578 = vmatprep.subr.bf16.mxu0 0
    %579 = vmatpush2.bf16.msra.mxu0 %v425
    %580 = vmatprep.subr.bf16.mxu0 0
    %581 = vmatpush2.bf16.msra.mxu0 %v424
    %582 = vmatprep.subr.bf16.mxu0 0
    %583 = vmatpush2.bf16.msra.mxu0 %v423
    %584 = vmatprep.subr.bf16.mxu0 0
    %585 = vmatpush2.bf16.msra.mxu0 %v422
    %586 = vmatprep.subr.bf16.mxu0 0
    %587 = vmatpush2.bf16.msra.mxu0 %v421
    %588 = vmatprep.subr.bf16.mxu0 0
    %589 = vmatpush2.bf16.msra.mxu0 %v420
    %590 = vmatprep.subr.bf16.mxu0 0
    %591 = vmatpush2.bf16.msra.mxu0 %v419
    %592 = vmatprep.subr.bf16.mxu0 0
    %593 = vmatpush2.bf16.msra.mxu0 %v418
    %594 = vmatprep.mubr.bf16.mxu0 %v174
    %595 = vmatmul.mubr.bf16.gmra.mxu0 %v173
    %v596 = vpop.f32.mrf.mxu0
    %v597 = vadd.f32 %v556, %v596
    %v598 = vpop.f32.mrf.mxu0
    %v599 = vpop.f32.mrf.mxu0
    %v600 = vadd.f32 %v559, %v599
    %v601 = vpop.f32.mrf.mxu0
    %602 = vdwg.mxu0
    %603 = vmatprep.subr.bf16.mxu0 0
    %604 = vmatpush1.bf16.msra.mxu0 0
    %605 = vmatprep.subr.bf16.mxu0 0
    %606 = vmatpush1.bf16.msra.mxu0 0
    %607 = vmatprep.subr.bf16.mxu0 0
    %608 = vmatpush1.bf16.msra.mxu0 0
    %609 = vmatprep.subr.bf16.mxu0 0
    %610 = vmatpush1.bf16.msra.mxu0 0
    %611 = vmatprep.subr.bf16.mxu0 0
    %612 = vmatpush1.bf16.msra.mxu0 0
    %613 = vmatprep.subr.bf16.mxu0 0
    %614 = vmatpush1.bf16.msra.mxu0 0
    %615 = vmatprep.subr.bf16.mxu0 0
    %616 = vmatpush1.bf16.msra.mxu0 0
    %617 = vmatprep.subr.bf16.mxu0 0
    %618 = vmatpush1.bf16.msra.mxu0 %v426
    %619 = vmatprep.subr.bf16.mxu0 0
    %620 = vmatpush2.bf16.msra.mxu0 0
    %621 = vmatprep.subr.bf16.mxu0 0
    %622 = vmatpush2.bf16.msra.mxu0 0
    %623 = vmatprep.subr.bf16.mxu0 0
    %624 = vmatpush2.bf16.msra.mxu0 0
    %625 = vmatprep.subr.bf16.mxu0 0
    %626 = vmatpush2.bf16.msra.mxu0 0
    %627 = vmatprep.subr.bf16.mxu0 0
    %628 = vmatpush2.bf16.msra.mxu0 0
    %629 = vmatprep.subr.bf16.mxu0 0
    %630 = vmatpush2.bf16.msra.mxu0 0
    %631 = vmatprep.subr.bf16.mxu0 0
    %632 = vmatpush2.bf16.msra.mxu0 0
    %633 = vmatprep.subr.bf16.mxu0 0
    %634 = vmatpush2.bf16.msra.mxu0 0
    %635 = vmatprep.mubr.bf16.mxu0 0
    %636 = vmatmul.mubr.bf16.gmra.mxu0 %v478
    %v637 = vpop.f32.mrf.mxu0
    %v638 = vadd.f32 %v597, %v637
    %v639 = vpop.f32.mrf.mxu0
    %v640 = vpop.f32.mrf.mxu0
    %v641 = vadd.f32 %v600, %v640
    %v642 = vpop.f32.mrf.mxu0
    %643 = vdwg.mxu0
    %v644 = vmax.f32 %v638, 0.0
    %v645 = vmax.f32 %v641, 0.0
    %v646 = vld [vmem:[%s3] sm:$0xff]
    %v647 = vld [vmem:[%s3 + $0x8] sm:$0xff]
    %v648 = vld [vmem:[%s3 + $0x10] sm:$0xff]
    %v649 = vld [vmem:[%s3 + $0x18] sm:$0xf]
    %v650 = vld [vmem:[%s4] sm:$0x1]
    %v652 = vlaneseq
    %v653 = vshrl.u32 %v652, 7
    %v654 = vsub.s32 0, %v653
    %v655 = vrot.slane %v650, %v654
    %vm657 = vcmask 228352
    %v659 = vsel %vm657, %v644, 0
    %v662 = vsel %vm657, %v645, 0
    %vm664 = vcmask 1043456
    %v666 = vsel %vm664, %v649, 0
    %668 = vmatprep.subr.mxu0 0.0
    %669 = vmatpush1.msra.mxu0 0.0
    %670 = vmatprep.subr.mxu0 0.0
    %671 = vmatpush1.msra.mxu0 0.0
    %672 = vmatprep.subr.mxu0 0.0
    %673 = vmatpush1.msra.mxu0 0.0
    %674 = vmatprep.subr.mxu0 0.0
    %675 = vmatpush1.msra.mxu0 0.0
    %676 = vmatprep.subr.mxu0 0.0
    %677 = vmatpush1.msra.mxu0 0.0
    %678 = vmatprep.subr.mxu0 0.0
    %679 = vmatpush1.msra.mxu0 0.0
    %680 = vmatprep.subr.mxu0 0.0
    %681 = vmatpush1.msra.mxu0 0.0
    %682 = vmatprep.subr.mxu0 0.0
    %683 = vmatpush1.msra.mxu0 0.0
    %684 = vmatprep.subr.mxu0 0.0
    %685 = vmatpush1.msra.mxu0 0.0
    %686 = vmatprep.subr.mxu0 0.0
    %687 = vmatpush1.msra.mxu0 0.0
    %688 = vmatprep.subr.mxu0 0.0
    %689 = vmatpush1.msra.mxu0 0.0
    %690 = vmatprep.subr.mxu0 0.0
    %691 = vmatpush1.msra.mxu0 0.0
    %692 = vmatprep.subr.mxu0 0.0
    %693 = vmatpush1.msra.mxu0 %v666
    %694 = vmatprep.subr.mxu0 0.0
    %695 = vmatpush1.msra.mxu0 %v648
    %696 = vmatprep.subr.mxu0 0.0
    %697 = vmatpush1.msra.mxu0 %v647
    %698 = vmatprep.subr.mxu0 0.0
    %699 = vmatpush1.msra.mxu0 %v646
    %700 = vmatprep.subr.mxu0 0.0
    %701 = vmatpush2.msra.mxu0 0.0
    %702 = vmatprep.subr.mxu0 0.0
    %703 = vmatpush2.msra.mxu0 0.0
    %704 = vmatprep.subr.mxu0 0.0
    %705 = vmatpush2.msra.mxu0 0.0
    %706 = vmatprep.subr.mxu0 0.0
    %707 = vmatpush2.msra.mxu0 0.0
    %708 = vmatprep.subr.mxu0 0.0
    %709 = vmatpush2.msra.mxu0 0.0
    %710 = vmatprep.subr.mxu0 0.0
    %711 = vmatpush2.msra.mxu0 0.0
    %712 = vmatprep.subr.mxu0 0.0
    %713 = vmatpush2.msra.mxu0 0.0
    %714 = vmatprep.subr.mxu0 0.0
    %715 = vmatpush2.msra.mxu0 0.0
    %716 = vmatprep.subr.mxu0 0.0
    %717 = vmatpush2.msra.mxu0 0.0
    %718 = vmatprep.subr.mxu0 0.0
    %719 = vmatpush2.msra.mxu0 0.0
    %720 = vmatprep.subr.mxu0 0.0
    %721 = vmatpush2.msra.mxu0 0.0
    %722 = vmatprep.subr.mxu0 0.0
    %723 = vmatpush2.msra.mxu0 0.0
    %724 = vmatprep.subr.mxu0 0.0
    %725 = vmatpush2.msra.mxu0 0.0
    %726 = vmatprep.subr.mxu0 0.0
    %727 = vmatpush2.msra.mxu0 0.0
    %728 = vmatprep.subr.mxu0 0.0
    %729 = vmatpush2.msra.mxu0 0.0
    %730 = vmatprep.subr.mxu0 0.0
    %731 = vmatpush2.msra.mxu0 0.0
    %732 = vmatprep.mubr.f32.mxu0 0.0
    %733 = vmatmul.mubr.f32.gmra.mxu0 %v659
    %v734 = vpop.f32.mrf.mxu0
    %v735 = vadd.f32 %v655, %v734
    %v736 = vpop.f32.mrf.mxu0
    %737 = vmatprep.mubr.f32.mxu0 0.0
    %738 = vmatmul.mubr.f32.gmra.mxu0 %v662
    %v739 = vpop.f32.mrf.mxu0
    %v740 = vadd.f32 %v655, %v739
    %v741 = vpop.f32.mrf.mxu0
    %742 = vdwg.mxu0
    %v743 = vmax.f32 %v735, 0.0
    %v744 = vmax.f32 %v740, 0.0
    %v745 = vld [vmem:[%s5] sm:$0xff]
    %v746 = vld [vmem:[%s5 + $0x8] sm:$0xff]
    %v747 = vld [vmem:[%s5 + $0x10] sm:$0xff]
    %v748 = vld [vmem:[%s5 + $0x18] sm:$0xff]
    %v749 = vld [vmem:[%s6] sm:$0x1]
    %v751 = vlaneseq
    %v752 = vshrl.u32 %v751, 7
    %v753 = vsub.s32 0, %v752
    %v754 = vrot.slane %v749, %v753
    %vm756 = vcmask 261120
    %v758 = vsel %vm756, %v743, 0
    %v761 = vsel %vm756, %v744, 0
    %763 = vmatprep.subr.mxu0 0.0
    %764 = vmatpush1.msra.mxu0 0.0
    %765 = vmatprep.subr.mxu0 0.0
    %766 = vmatpush1.msra.mxu0 0.0
    %767 = vmatprep.subr.mxu0 0.0
    %768 = vmatpush1.msra.mxu0 0.0
    %769 = vmatprep.subr.mxu0 0.0
    %770 = vmatpush1.msra.mxu0 0.0
    %771 = vmatprep.subr.mxu0 0.0
    %772 = vmatpush1.msra.mxu0 0.0
    %773 = vmatprep.subr.mxu0 0.0
    %774 = vmatpush1.msra.mxu0 0.0
    %775 = vmatprep.subr.mxu0 0.0
    %776 = vmatpush1.msra.mxu0 0.0
    %777 = vmatprep.subr.mxu0 0.0
    %778 = vmatpush1.msra.mxu0 0.0
    %779 = vmatprep.subr.mxu0 0.0
    %780 = vmatpush1.msra.mxu0 0.0
    %781 = vmatprep.subr.mxu0 0.0
    %782 = vmatpush1.msra.mxu0 0.0
    %783 = vmatprep.subr.mxu0 0.0
    %784 = vmatpush1.msra.mxu0 0.0
    %785 = vmatprep.subr.mxu0 0.0
    %786 = vmatpush1.msra.mxu0 0.0
    %787 = vmatprep.subr.mxu0 0.0
    %788 = vmatpush1.msra.mxu0 %v748
    %789 = vmatprep.subr.mxu0 0.0
    %790 = vmatpush1.msra.mxu0 %v747
    %791 = vmatprep.subr.mxu0 0.0
    %792 = vmatpush1.msra.mxu0 %v746
    %793 = vmatprep.subr.mxu0 0.0
    %794 = vmatpush1.msra.mxu0 %v745
    %795 = vmatprep.subr.mxu0 0.0
    %796 = vmatpush2.msra.mxu0 0.0
    %797 = vmatprep.subr.mxu0 0.0
    %798 = vmatpush2.msra.mxu0 0.0
    %799 = vmatprep.subr.mxu0 0.0
    %800 = vmatpush2.msra.mxu0 0.0
    %801 = vmatprep.subr.mxu0 0.0
    %802 = vmatpush2.msra.mxu0 0.0
    %803 = vmatprep.subr.mxu0 0.0
    %804 = vmatpush2.msra.mxu0 0.0
    %805 = vmatprep.subr.mxu0 0.0
    %806 = vmatpush2.msra.mxu0 0.0
    %807 = vmatprep.subr.mxu0 0.0
    %808 = vmatpush2.msra.mxu0 0.0
    %809 = vmatprep.subr.mxu0 0.0
    %810 = vmatpush2.msra.mxu0 0.0
    %811 = vmatprep.subr.mxu0 0.0
    %812 = vmatpush2.msra.mxu0 0.0
    %813 = vmatprep.subr.mxu0 0.0
    %814 = vmatpush2.msra.mxu0 0.0
    %815 = vmatprep.subr.mxu0 0.0
    %816 = vmatpush2.msra.mxu0 0.0
    %817 = vmatprep.subr.mxu0 0.0
    %818 = vmatpush2.msra.mxu0 0.0
    %819 = vmatprep.subr.mxu0 0.0
    %820 = vmatpush2.msra.mxu0 0.0
    %821 = vmatprep.subr.mxu0 0.0
    %822 = vmatpush2.msra.mxu0 0.0
    %823 = vmatprep.subr.mxu0 0.0
    %824 = vmatpush2.msra.mxu0 0.0
    %825 = vmatprep.subr.mxu0 0.0
    %826 = vmatpush2.msra.mxu0 0.0
    %827 = vmatprep.mubr.f32.mxu0 0.0
    %828 = vmatmul.mubr.f32.gmra.mxu0 %v758
    %v829 = vpop.f32.mrf.mxu0
    %v830 = vadd.f32 %v754, %v829
    %v831 = vpop.f32.mrf.mxu0
    %832 = vmatprep.mubr.f32.mxu0 0.0
    %833 = vmatmul.mubr.f32.gmra.mxu0 %v761
    %v834 = vpop.f32.mrf.mxu0
    %v835 = vadd.f32 %v754, %v834
    %v836 = vpop.f32.mrf.mxu0
    %837 = vdwg.mxu0
    %v838 = vmax.f32 %v830, 0.0
    %v839 = vmax.f32 %v835, 0.0
    %v840 = vld [vmem:[%s7] sm:$0xff]
    %v841 = vld [vmem:[%s7 + $0x8] sm:$0xff]
    %v842 = vld [vmem:[%s7 + $0x10] sm:$0xff]
    %v843 = vld [vmem:[%s7 + $0x18] sm:$0xf]
    %v844 = vld [vmem:[%s8] sm:$0x1]
    %v846 = vlaneseq
    %v847 = vshrl.u32 %v846, 7
    %v848 = vsub.s32 0, %v847
    %v849 = vrot.slane %v844, %v848
    %v852 = vsel %vm657, %v838, 0
    %v855 = vsel %vm657, %v839, 0
    %v858 = vsel %vm664, %v843, 0
    %860 = vmatprep.subr.mxu0 0.0
    %861 = vmatpush1.msra.mxu0 0.0
    %862 = vmatprep.subr.mxu0 0.0
    %863 = vmatpush1.msra.mxu0 0.0
    %864 = vmatprep.subr.mxu0 0.0
    %865 = vmatpush1.msra.mxu0 0.0
    %866 = vmatprep.subr.mxu0 0.0
    %867 = vmatpush1.msra.mxu0 0.0
    %868 = vmatprep.subr.mxu0 0.0
    %869 = vmatpush1.msra.mxu0 0.0
    %870 = vmatprep.subr.mxu0 0.0
    %871 = vmatpush1.msra.mxu0 0.0
    %872 = vmatprep.subr.mxu0 0.0
    %873 = vmatpush1.msra.mxu0 0.0
    %874 = vmatprep.subr.mxu0 0.0
    %875 = vmatpush1.msra.mxu0 0.0
    %876 = vmatprep.subr.mxu0 0.0
    %877 = vmatpush1.msra.mxu0 0.0
    %878 = vmatprep.subr.mxu0 0.0
    %879 = vmatpush1.msra.mxu0 0.0
    %880 = vmatprep.subr.mxu0 0.0
    %881 = vmatpush1.msra.mxu0 0.0
    %882 = vmatprep.subr.mxu0 0.0
    %883 = vmatpush1.msra.mxu0 0.0
    %884 = vmatprep.subr.mxu0 0.0
    %885 = vmatpush1.msra.mxu0 %v858
    %886 = vmatprep.subr.mxu0 0.0
    %887 = vmatpush1.msra.mxu0 %v842
    %888 = vmatprep.subr.mxu0 0.0
    %889 = vmatpush1.msra.mxu0 %v841
    %890 = vmatprep.subr.mxu0 0.0
    %891 = vmatpush1.msra.mxu0 %v840
    %892 = vmatprep.subr.mxu0 0.0
    %893 = vmatpush2.msra.mxu0 0.0
    %894 = vmatprep.subr.mxu0 0.0
    %895 = vmatpush2.msra.mxu0 0.0
    %896 = vmatprep.subr.mxu0 0.0
    %897 = vmatpush2.msra.mxu0 0.0
    %898 = vmatprep.subr.mxu0 0.0
    %899 = vmatpush2.msra.mxu0 0.0
    %900 = vmatprep.subr.mxu0 0.0
    %901 = vmatpush2.msra.mxu0 0.0
    %902 = vmatprep.subr.mxu0 0.0
    %903 = vmatpush2.msra.mxu0 0.0
    %904 = vmatprep.subr.mxu0 0.0
    %905 = vmatpush2.msra.mxu0 0.0
    %906 = vmatprep.subr.mxu0 0.0
    %907 = vmatpush2.msra.mxu0 0.0
    %908 = vmatprep.subr.mxu0 0.0
    %909 = vmatpush2.msra.mxu0 0.0
    %910 = vmatprep.subr.mxu0 0.0
    %911 = vmatpush2.msra.mxu0 0.0
    %912 = vmatprep.subr.mxu0 0.0
    %913 = vmatpush2.msra.mxu0 0.0
    %914 = vmatprep.subr.mxu0 0.0
    %915 = vmatpush2.msra.mxu0 0.0
    %916 = vmatprep.subr.mxu0 0.0
    %917 = vmatpush2.msra.mxu0 0.0
    %918 = vmatprep.subr.mxu0 0.0
    %919 = vmatpush2.msra.mxu0 0.0
    %920 = vmatprep.subr.mxu0 0.0
    %921 = vmatpush2.msra.mxu0 0.0
    %922 = vmatprep.subr.mxu0 0.0
    %923 = vmatpush2.msra.mxu0 0.0
    %924 = vmatprep.mubr.f32.mxu0 0.0
    %925 = vmatmul.mubr.f32.gmra.mxu0 %v852
    %v926 = vpop.f32.mrf.mxu0
    %v927 = vadd.f32 %v849, %v926
    %v928 = vpop.f32.mrf.mxu0
    %929 = vmatprep.mubr.f32.mxu0 0.0
    %930 = vmatmul.mubr.f32.gmra.mxu0 %v855
    %v931 = vpop.f32.mrf.mxu0
    %v932 = vadd.f32 %v849, %v931
    %v933 = vpop.f32.mrf.mxu0
    %934 = vdwg.mxu0
    %vm935 = vcmask 80896
    %v936 = vsel %vm935, %v927, -inf
    %937 = vmax.xlane.f32.xlu0 %v936
    %v938 = vpop.xlane.xlu0 %937
    %v939 = vsel %vm935, %v932, -inf
    %940 = vmax.xlane.f32.xlu0 %v939
    %v941 = vpop.xlane.xlu0 %940
    %v942 = vsub.f32 %v927, %v938
    %v943 = vsub.f32 %v932, %v941
    %v944 = vmul.f32 %v942, 1.442695
    %v945 = vpow.pop %v944
    %v946 = vmul.f32 %v943, 1.442695
    %v947 = vpow.pop %v946
    %v948 = vsel %vm935, %v945, 0.0
    %949 = vadd.xlane.f32.xlu0 %v948
    %v950 = vpop.xlane.xlu0 %949
    %v951 = vsel %vm935, %v947, 0.0
    %952 = vadd.xlane.f32.xlu0 %v951
    %v953 = vpop.xlane.xlu0 %952
    %v954 = vrcp.pop %v950
    %v955 = vrcp.pop %v953
    %v956 = vmul.f32 %v945, %v954
    %v957 = vmul.f32 %v947, %v955
    %958 = vst.msk [vmem:[#allocation2] sm:$0xff] %vm935, %v956
    %959 = vst.msk [vmem:[#allocation2 + $0x8] sm:$0xff] %vm935, %v957
    // Predicated region
    $region38: #{tpu_custom_call.1} parent=1 // pred_check
      _
    $region39: #{tpu_custom_call.1} parent=1 // pred_check_branch
      %961 = sbr.rel (0) target = $region41
    $region40: #{tpu_custom_call.1} parent=1 // pred_region
      %s963 = ssub.s32 256, 256
      %964 = vsyncadd [#allocation3], %s963
      %s965 = sshll.u32 [#allocation2], 4
      %s966 = int_to_ptr.vmem [resolvable:$true] %s965
      %971 = dma.vmem_to_hbm [thread:$0]  %s966, 256, %s9, [#allocation3], 128, 128, 8
    $region41: #{tpu_custom_call.1} parent=1 // pred_fallthru
      _
    // Predicated region
    $region42: #{tpu_custom_call.1} parent=1 // pred_check
      _
    $region43: #{tpu_custom_call.1} parent=1 // pred_check_branch
      %973 = sbr.rel (0) target = $region45
    $region44: #{tpu_custom_call.1} parent=1 // pred_region
      %974 = dma.done [#allocation3], 256
    $region45: #{tpu_custom_call.1} parent=1 // pred_fallthru
      _
    %975 = vsyncpa [#allocation3], 1

</llo_original>
